<compile_context>
chip_gen: v7x
topology: tpu7x:2x2x1
jax: 0.10.0
libtpu: 0.0.40
codegen_flags: <defaults>
</compile_context>

<pallas_src>
import math
import numpy as np
import jax
import jax.numpy as jnp
from jax.experimental import pallas as pl
from jax.experimental.pallas import tpu as pltpu


# ----------------------------------------------------------------------------
# Host-side construction of the deterministic S2-grid transform matrices
# (the equivalents of e3nn's ToS2Grid / FromS2Grid buffers, default
# "component" normalization):
#   beta_b  = (b + 0.5) / res_beta * pi,   alpha_a = a / res_alpha * 2*pi
#   ToS2Grid:   f(b,a) = sum_{l,m} x_{lm} * sqrt(4pi/((2l+1)(lmax_in+1))) * Y_{lm}(b,a)
#   FromS2Grid: x_{lm} = sqrt((2l+1)(lmax_out+1)/(4pi)) *
#                        sum_{b,a} w_beta[b] * (2pi/res_alpha) * Y_{lm}(b,a) * f(b,a)
# with orthonormal real spherical harmonics and Driscoll-Healy beta quadrature,
# so FromS2Grid(ToS2Grid(x)) == x for band-limited signals (asserted below).
# TODO(synk): e3nn's internal per-(l,m) sign convention (Condon-Shortley phase) may
# differ from this self-consistent pair; torch.fft fast paths are replaced by matmuls.
# ----------------------------------------------------------------------------
def _assoc_legendre_orthonormal(lmax, cb, sb):
    """Orthonormalized associated Legendre \\bar P_l^m(cos beta), m >= 0."""
    P = {}
    P[(0, 0)] = np.full_like(cb, math.sqrt(1.0 / (4.0 * math.pi)))
    for m in range(1, lmax + 1):
        P[(m, m)] = math.sqrt((2 * m + 1) / (2.0 * m)) * sb * P[(m - 1, m - 1)]
    for m in range(0, lmax):
        P[(m + 1, m)] = math.sqrt(2 * m + 3) * cb * P[(m, m)]
    for m in range(0, lmax + 1):
        for l in range(m + 2, lmax + 1):
            a = math.sqrt((4.0 * l * l - 1.0) / (l * l - m * m))
            b = math.sqrt(((l - 1) ** 2 - m * m) / (4.0 * (l - 1) ** 2 - 1.0))
            P[(l, m)] = a * (cb * P[(l - 1, m)] - b * P[(l - 2, m)])
    return P


def _real_sh_on_grid(lmax, betas, alphas):
    """Orthonormal real SH Y[(l,m) flat, beta, alpha]; m ordered -l..l per l."""
    cb, sb = np.cos(betas), np.abs(np.sin(betas))
    P = _assoc_legendre_orthonormal(lmax, cb, sb)
    dim = (lmax + 1) ** 2
    Y = np.zeros((dim, len(betas), len(alphas)), dtype=np.float64)
    i = 0
    for l in range(lmax + 1):
        for m in range(-l, l + 1):
            pb = P[(l, abs(m))]
            if m < 0:
                fa = math.sqrt(2.0) * np.sin(abs(m) * alphas)
            elif m == 0:
                fa = np.ones_like(alphas)
            else:
                fa = math.sqrt(2.0) * np.cos(m * alphas)
            Y[i] = pb[:, None] * fa[None, :]
            i += 1
    return Y


def _dh_quadrature_weights(res_beta):
    """Driscoll-Healy weights: sum_b w[b] g(beta_b) ~= int g(beta) sin(beta) dbeta."""
    assert res_beta % 2 == 0
    b = res_beta // 2
    j = np.arange(res_beta)
    theta = np.pi * (2.0 * j + 1.0) / (4.0 * b)
    k = np.arange(b)
    inner = np.sum(np.sin((2 * k[None, :] + 1) * theta[:, None]) / (2 * k[None, :] + 1), axis=1)
    return (2.0 / b) * np.sin(theta) * inner


def build_to_matrix(lmax_in, betas, alphas):
    """[dim_in, res_beta*res_alpha] matrix of ToS2Grid ('component' norm)."""
    Y = _real_sh_on_grid(lmax_in, betas, alphas)
    dim = (lmax_in + 1) ** 2
    scale = np.zeros((dim,))
    i = 0
    for l in range(lmax_in + 1):
        for _m in range(-l, l + 1):
            scale[i] = math.sqrt(4.0 * math.pi / ((2 * l + 1) * (lmax_in + 1)))
            i += 1
    TO = scale[:, None, None] * Y
    return TO.reshape(dim, -1)


def build_from_matrix(lmax_out, betas, alphas):
    """[res_beta*res_alpha, dim_out] matrix of FromS2Grid ('component' norm)."""
    Y = _real_sh_on_grid(lmax_out, betas, alphas)
    dim = (lmax_out + 1) ** 2
    scale = np.zeros((dim,))
    i = 0
    for l in range(lmax_out + 1):
        for _m in range(-l, l + 1):
            scale[i] = math.sqrt((2 * l + 1) * (lmax_out + 1) / (4.0 * math.pi))
            i += 1
    w_beta = _dh_quadrature_weights(len(betas))
    w_alpha = 2.0 * math.pi / len(alphas)
    FRM = scale[:, None, None] * w_beta[None, :, None] * w_alpha * Y  # [dim, B, A]
    return FRM.reshape(dim, -1).T  # [B*A, dim_out]


# ----------------------------------------------------------------------------
# Pallas kernel (batch-in-lane layout).
#   xs_ref : [dim1+dim2, tz]        stacked [x1^T ; x2^T] batch tile (Z on lanes)
#   to_ref : [2*ba_pad, dim1+dim2]  block-diag [[TO1^T, 0], [0, TO2^T]] (sublane-padded)
#   frm_ref: [dim_out, ba_pad]      FromS2Grid^T (zero-padded columns)
#   out_ref: [dim_out, tz]          output^T (lane-dense stores)
# ----------------------------------------------------------------------------
def gaunt_s2_kernel(xs_ref, to_ref, frm_ref, out_ref):
    # One fused MXU matmul produces both S2 grids stacked on the sublane axis.
    g = jnp.dot(to_ref[...], xs_ref[...], preferred_element_type=jnp.float32)  # [2*ba_pad, tz]
    ba_pad = frm_ref.shape[1]                     # static; sublane-aligned split point
    prod = g[:ba_pad, :] * g[ba_pad:, :]          # pointwise product on the S2 grid (VPU)
    out_ref[...] = jnp.dot(frm_ref[...], prod,
                           preferred_element_type=jnp.float32).astype(out_ref.dtype)


def _gaunt_pallas_forward(xs, to_blk, frm_t, *, dim_out, tz):
    k, Zp = xs.shape
    two_ba_pad, _ = to_blk.shape
    ba_pad = frm_t.shape[1]
    return pl.pallas_call(
        gaunt_s2_kernel,
        out_shape=jax.ShapeDtypeStruct((dim_out, Zp), jnp.float32),
        grid_spec=pltpu.PrefetchScalarGridSpec(
            num_scalar_prefetch=0,
            grid=(Zp // tz,),
            in_specs=[
                pl.BlockSpec((k, tz), lambda z: (0, z)),           # batch tile (lanes)
                pl.BlockSpec((two_ba_pad, k), lambda z: (0, 0)),   # constant weights
                pl.BlockSpec((dim_out, ba_pad), lambda z: (0, 0)),
            ],
            out_specs=pl.BlockSpec((dim_out, tz), lambda z: (0, z)),  # lane-dense out
        ),
        compiler_params=pltpu.CompilerParams(
            dimension_semantics=("parallel",)),   # shards batch tiles across TCs (v7x)
    )(xs, to_blk, frm_t)


class GauntTensorProductS2GridPallas:
    """Pallas TPU version of GauntTensorProductS2Grid.

    __call__(x1: [Z, (lmax1+1)^2], x2: [Z, (lmax2+1)^2]) -> [Z, (lmax_out+1)^2]
    """

    def __init__(self, lmax1, lmax2, lmax_out, res_beta=None, res_alpha=None):
        lmax = max(lmax1, lmax2, lmax_out)
        if res_beta is None or res_alpha is None:
            res_beta = 2 * (lmax + 1)
            res_alpha = 2 * lmax + 1
        self.betas = (np.arange(res_beta) + 0.5) / res_beta * np.pi
        self.alphas = np.arange(res_alpha) / res_alpha * 2.0 * np.pi
        self.dim1 = (lmax1 + 1) ** 2
        self.dim2 = (lmax2 + 1) ** 2
        self.dim_out = (lmax_out + 1) ** 2

        # e3nn ToS2Grid / FromS2Grid equivalents (original orientation, for reference)
        self.TO1 = build_to_matrix(lmax1, self.betas, self.alphas)        # [dim1, BA]
        self.TO2 = build_to_matrix(lmax2, self.betas, self.alphas)        # [dim2, BA]
        self.FRM = build_from_matrix(lmax_out, self.betas, self.alphas)   # [BA, dim_out]

        # Fused batch-in-lane operands (built once, like nn.Module buffers).
        ba = res_beta * res_alpha
        ba_pad = ((ba + 7) // 8) * 8            # sublane-aligned g1/g2 split point
        to_blk = np.zeros((2 * ba_pad, self.dim1 + self.dim2), dtype=np.float32)
        to_blk[:ba, : self.dim1] = self.TO1.T
        to_blk[ba_pad:ba_pad + ba, self.dim1:] = self.TO2.T
        frm_t = np.zeros((self.dim_out, ba_pad), dtype=np.float32)
        frm_t[:, :ba] = self.FRM.T
        self.ba_pad = ba_pad
        self.to_blk = jnp.asarray(to_blk)       # [2*ba_pad, dim1+dim2]
        self.frm_t = jnp.asarray(frm_t)         # [dim_out, ba_pad]
        # Note: at tiny lmax one could further precontract TO1⊗TO2·FRM into a single
        # bilinear operator; kept as the (general) S2-grid path here.

    def __call__(self, x1, x2, *, tz=1024):
        Z = x1.shape[0]
        assert x1.shape == (Z, self.dim1) and x2.shape == (Z, self.dim2)
        # One transpose outside the kernel: batch goes onto the lane axis.
        xs = jnp.concatenate([x1, x2], axis=1).T.astype(jnp.float32)     # [dim1+dim2, Z]
        # Lane tile must be a multiple of 128; pad Z up to a multiple of the tile.
        tz_eff = max(128, (min(tz, pl.cdiv(Z, 128) * 128) // 128) * 128)
        Zp = pl.cdiv(Z, tz_eff) * tz_eff
        if Zp != Z:
            xs = jnp.pad(xs, ((0, 0), (0, Zp - Z)))
        out_t = _gaunt_pallas_forward(xs, self.to_blk, self.frm_t,
                                      dim_out=self.dim_out, tz=tz_eff)
        return out_t[:, :Z].T.astype(x1.dtype)


def reference(x1, x2, TO1, TO2, FRM):
    g1 = jnp.dot(x1, jnp.asarray(TO1, jnp.float32))
    g2 = jnp.dot(x2, jnp.asarray(TO2, jnp.float32))
    return jnp.dot(g1 * g2, jnp.asarray(FRM, jnp.float32))


if __name__ == "__main__":
    # irreps_in1 = 0e+1o+2e, irreps_in2 = 0e+1o, irreps_out = 0e+1o+2e
    lmax1, lmax2, lmax_out = 2, 1, 2
    mod = GauntTensorProductS2GridPallas(lmax1, lmax2, lmax_out)

    # sanity: FromS2Grid is the exact inverse of a matching ToS2Grid
    roundtrip = build_to_matrix(lmax_out, mod.betas, mod.alphas) @ mod.FRM
    np.testing.assert_allclose(roundtrip, np.eye((lmax_out + 1) ** 2), atol=1e-5)

    Z = 64
    key = jax.random.PRNGKey(0)
    k1, k2 = jax.random.split(key)
    x1 = jax.random.normal(k1, (Z, (lmax1 + 1) ** 2), dtype=jnp.float32)
    x2 = jax.random.normal(k2, (Z, (lmax2 + 1) ** 2), dtype=jnp.float32)

    out = mod(x1, x2)
    out = jax.block_until_ready(out)

    ref = reference(x1, x2, mod.TO1, mod.TO2, mod.FRM)
    assert out.shape == (Z, (lmax_out + 1) ** 2)
    np.testing.assert_allclose(np.asarray(out), np.asarray(ref), rtol=1e-4, atol=1e-4)

    print("KERNEL_OK")
</pallas_src>

<mosaic_0001>
module attributes {stable_mosaic.version = 11 : i64} {
  func.func @gaunt_s2_kernel(%arg0: i32, %arg1: memref<13x128xf32, #tpu.memory_space<vmem>>, %arg2: memref<64x13xf32, #tpu.memory_space<vmem>>, %arg3: memref<9x32xf32, #tpu.memory_space<vmem>>, %arg4: memref<9x128xf32, #tpu.memory_space<vmem>>) attributes {dimension_semantics = [#tpu.dimension_semantics<parallel>], iteration_bounds = array<i64: 1>, scalar_prefetch = 0 : i64, scratch_operands = 0 : i64, tpu.core_type = #tpu.core_type<tc>, window_params = [{transform_indices = @transform_0, window_bounds = array<i64: 13, 128>}, {pipeline_mode = #tpu.pipeline_mode<synchronous>, transform_indices = @transform_1, window_bounds = array<i64: 64, 13>}, {pipeline_mode = #tpu.pipeline_mode<synchronous>, transform_indices = @transform_2, window_bounds = array<i64: 9, 32>}, {transform_indices = @transform_3, window_bounds = array<i64: 9, 128>}]} {
    %c0 = arith.constant 0 : index
    %c0_0 = arith.constant 0 : index
    %0 = vector.load %arg2[%c0, %c0_0] : memref<64x13xf32, #tpu.memory_space<vmem>>, vector<64x13xf32>
    %c0_1 = arith.constant 0 : index
    %c0_2 = arith.constant 0 : index
    %1 = vector.load %arg1[%c0_1, %c0_2] : memref<13x128xf32, #tpu.memory_space<vmem>>, vector<13x128xf32>
    %cst = arith.constant dense<0.000000e+00> : vector<64x128xf32>
    %2 = tpu.matmul %0, %1, %cst {dimension_numbers = #tpu.dot_dimension_numbers<[1], [0], [0], [1], [0, 0, 1, 1], [], []>} : vector<64x13xf32>, vector<13x128xf32>, vector<64x128xf32> -> vector<64x128xf32>
    %3 = vector.extract_strided_slice %2 {offsets = [0, 0], sizes = [32, 128], strides = [1, 1]} : vector<64x128xf32> to vector<32x128xf32>
    %4 = vector.extract_strided_slice %2 {offsets = [32, 0], sizes = [32, 128], strides = [1, 1]} : vector<64x128xf32> to vector<32x128xf32>
    %5 = arith.mulf %3, %4 : vector<32x128xf32>
    %c0_3 = arith.constant 0 : index
    %c0_4 = arith.constant 0 : index
    %6 = vector.load %arg3[%c0_3, %c0_4] : memref<9x32xf32, #tpu.memory_space<vmem>>, vector<9x32xf32>
    %cst_5 = arith.constant dense<0.000000e+00> : vector<9x128xf32>
    %7 = tpu.matmul %6, %5, %cst_5 {dimension_numbers = #tpu.dot_dimension_numbers<[1], [0], [0], [1], [0, 0, 1, 1], [], []>} : vector<9x32xf32>, vector<32x128xf32>, vector<9x128xf32> -> vector<9x128xf32>
    %c0_6 = arith.constant 0 : index
    %c0_7 = arith.constant 0 : index
    %8 = vector.load %arg4[%c0_6, %c0_7] : memref<9x128xf32, #tpu.memory_space<vmem>>, vector<9x128xf32>
    tpu.vector_store %arg4[%c0_6, %c0_7], %7 {strides = array<i32>} : memref<9x128xf32, #tpu.memory_space<vmem>>, vector<9x128xf32>,
    return
  }
  func.func @transform_0(%arg0: i32) -> (i32, i32) {
    %c0_i32 = arith.constant 0 : i32
    %c0_i32_0 = arith.constant 0 : i32
    return %c0_i32, %arg0 : i32, i32
  }
  func.func @transform_1(%arg0: i32) -> (i32, i32) {
    %c0_i32 = arith.constant 0 : i32
    %c0_i32_0 = arith.constant 0 : i32
    %c0_i32_1 = arith.constant 0 : i32
    return %c0_i32, %c0_i32_0 : i32, i32
  }
  func.func @transform_2(%arg0: i32) -> (i32, i32) {
    %c0_i32 = arith.constant 0 : i32
    %c0_i32_0 = arith.constant 0 : i32
    %c0_i32_1 = arith.constant 0 : i32
    return %c0_i32, %c0_i32_0 : i32, i32
  }
  func.func @transform_3(%arg0: i32) -> (i32, i32) {
    %c0_i32 = arith.constant 0 : i32
    %c0_i32_0 = arith.constant 0 : i32
    return %c0_i32, %arg0 : i32, i32
  }
}

</mosaic_0001>

<llo_original>
// kernel: tpu_custom_call.1
$region0: #{tpu_custom_call.1}
  #allocation0 [shape = 'u32[]', space=smem, size = 0x4, offset = 0x4, fixed_abs, tag = 'smem constant byte address 0x4 - core index']
  #allocation1 [shape = 'u32[144,128]{1,0:T(1,128)}', space=vmem, size = 0x12000, scoped, tag = 'internal scratch']
  %s0 = inlined_call_operand.vmem [shape: f32[13,128], index: 0, kind: input, shape index: {}]
  %s1 = inlined_call_operand.vmem [shape: f32[64,13], index: 1, kind: input, shape index: {}]
  %s2 = inlined_call_operand.vmem [shape: f32[9,32], index: 2, kind: input, shape index: {}]
  %s3 = inlined_call_operand.hbm [shape: f32[9,128], index: 3, kind: output, shape index: {}]
  %s4 = sld [smem:[#allocation0]]
  $region22: #{tpu_custom_call.1} parent=0
    _
  %s6 = ssub.s32 1, %s4
  %s7 = scalar_select 0, %s6, %s4
  $region1: #{tpu_custom_call.1} parent=0
    #allocation2 [shape = 'u8[8192]{0}', space=vmem, size = 0x2000, scoped, tag = 'output window, operand 0, single buffered']
    #allocation3 [shape = 's32[1]{0}', space=sflag, size = 0x4, scoped, tag = 'scoped memory for tpu_custom_call.1']
    %8 = vsyncpa [#allocation3], 0
    // Predicated region
    $region2: #{tpu_custom_call.1} parent=1 // pred_check
      _
    $region3: #{tpu_custom_call.1} parent=1 // pred_check_branch
      %10 = sbr.rel (0) target = $region5
    $region4: #{tpu_custom_call.1} parent=1 // pred_region
      _
    $region5: #{tpu_custom_call.1} parent=1 // pred_fallthru
      _
    // Predicated region
    $region6: #{tpu_custom_call.1} parent=1 // pred_check
      _
    $region7: #{tpu_custom_call.1} parent=1 // pred_check_branch
      %12 = sbr.rel (0) target = $region9
    $region8: #{tpu_custom_call.1} parent=1 // pred_region
      _
    $region9: #{tpu_custom_call.1} parent=1 // pred_fallthru
      _
    // Predicated region
    $region10: #{tpu_custom_call.1} parent=1 // pred_check
      _
    $region11: #{tpu_custom_call.1} parent=1 // pred_check_branch
      %14 = sbr.rel (0) target = $region13
    $region12: #{tpu_custom_call.1} parent=1 // pred_region
      _
    $region13: #{tpu_custom_call.1} parent=1 // pred_fallthru
      _
    %v15 = vld [vmem:[%s1] sm:$0xff]
    %v16 = vld [vmem:[%s1 + $0x8] sm:$0xff]
    %v17 = vld [vmem:[%s1 + $0x10] sm:$0xff]
    %v18 = vld [vmem:[%s1 + $0x18] sm:$0xff]
    %v19 = vld [vmem:[%s1 + $0x20] sm:$0xff]
    %v20 = vld [vmem:[%s1 + $0x28] sm:$0xff]
    %v21 = vld [vmem:[%s1 + $0x30] sm:$0xff]
    %v22 = vld [vmem:[%s1 + $0x38] sm:$0xff]
    %v23 = vld [vmem:[%s0] sm:$0xff]
    %v24 = vld [vmem:[%s0 + $0x8] sm:$0x1f]
    %vm25 = vcmask 105472
    %v27 = vsel %vm25, %v15, 0
    %v30 = vsel %vm25, %v16, 0
    %v33 = vsel %vm25, %v17, 0
    %v36 = vsel %vm25, %v18, 0
    %v39 = vsel %vm25, %v19, 0
    %v42 = vsel %vm25, %v20, 0
    %v45 = vsel %vm25, %v21, 0
    %v48 = vsel %vm25, %v22, 0
    %vm50 = vcmask 1044480
    %v52 = vsel %vm50, %v24, 0
    %54 = vmatprep.subr.mxu0 0.0
    %55 = vmatpush1.msra.mxu0 %v23
    %56 = vmatprep.subr.mxu0 0.0
    %57 = vmatpush1.msra.mxu0 %v52
    %58 = vmatprep.subr.mxu0 0.0
    %59 = vmatpush1.msra.mxu0 0.0
    %60 = vmatprep.subr.mxu0 0.0
    %61 = vmatpush1.msra.mxu0 0.0
    %62 = vmatprep.subr.mxu0 0.0
    %63 = vmatpush1.msra.mxu0 0.0
    %64 = vmatprep.subr.mxu0 0.0
    %65 = vmatpush1.msra.mxu0 0.0
    %66 = vmatprep.subr.mxu0 0.0
    %67 = vmatpush1.msra.mxu0 0.0
    %68 = vmatprep.subr.mxu0 0.0
    %69 = vmatpush1.msra.mxu0 0.0
    %70 = vmatprep.subr.mxu0 0.0
    %71 = vmatpush1.msra.mxu0 0.0
    %72 = vmatprep.subr.mxu0 0.0
    %73 = vmatpush1.msra.mxu0 0.0
    %74 = vmatprep.subr.mxu0 0.0
    %75 = vmatpush1.msra.mxu0 0.0
    %76 = vmatprep.subr.mxu0 0.0
    %77 = vmatpush1.msra.mxu0 0.0
    %78 = vmatprep.subr.mxu0 0.0
    %79 = vmatpush1.msra.mxu0 0.0
    %80 = vmatprep.subr.mxu0 0.0
    %81 = vmatpush1.msra.mxu0 0.0
    %82 = vmatprep.subr.mxu0 0.0
    %83 = vmatpush1.msra.mxu0 0.0
    %84 = vmatprep.subr.mxu0 0.0
    %85 = vmatpush1.msra.mxu0 0.0
    %86 = vmatprep.subr.mxu0 0.0
    %87 = vmatpush1.msra.mxu0 0.0
    %88 = vmatprep.subr.mxu0 0.0
    %89 = vmatpush1.msra.mxu0 0.0
    %90 = vmatprep.subr.mxu0 0.0
    %91 = vmatpush1.msra.mxu0 0.0
    %92 = vmatprep.subr.mxu0 0.0
    %93 = vmatpush1.msra.mxu0 0.0
    %94 = vmatprep.subr.mxu0 0.0
    %95 = vmatpush1.msra.mxu0 0.0
    %96 = vmatprep.subr.mxu0 0.0
    %97 = vmatpush1.msra.mxu0 0.0
    %98 = vmatprep.subr.mxu0 0.0
    %99 = vmatpush1.msra.mxu0 0.0
    %100 = vmatprep.subr.mxu0 0.0
    %101 = vmatpush1.msra.mxu0 0.0
    %102 = vmatprep.subr.mxu0 0.0
    %103 = vmatpush1.msra.mxu0 0.0
    %104 = vmatprep.subr.mxu0 0.0
    %105 = vmatpush1.msra.mxu0 0.0
    %106 = vmatprep.subr.mxu0 0.0
    %107 = vmatpush1.msra.mxu0 0.0
    %108 = vmatprep.subr.mxu0 0.0
    %109 = vmatpush1.msra.mxu0 0.0
    %110 = vmatprep.subr.mxu0 0.0
    %111 = vmatpush1.msra.mxu0 0.0
    %112 = vmatprep.subr.mxu0 0.0
    %113 = vmatpush1.msra.mxu0 0.0
    %114 = vmatprep.subr.mxu0 0.0
    %115 = vmatpush1.msra.mxu0 0.0
    %116 = vmatprep.subr.mxu0 0.0
    %117 = vmatpush1.msra.mxu0 0.0
    %118 = vmatprep.mubr.f32.mxu0 0.0
    %119 = vmatmul.mubr.f32.gmra.mrb[0].mxu0 %v27
    %v120 = vpop.f32.mrb[0].mxu0
    %v121 = vadd.f32 0.0, %v120
    %v122 = vpop.f32.mrb[0].mxu0
    %123 = vmatprep.mubr.f32.mxu0 0.0
    %124 = vmatmul.mubr.f32.gmra.mrb[0].mxu0 %v30
    %v125 = vpop.f32.mrb[0].mxu0
    %v126 = vadd.f32 0.0, %v125
    %v127 = vpop.f32.mrb[0].mxu0
    %128 = vmatprep.mubr.f32.mxu0 0.0
    %129 = vmatmul.mubr.f32.gmra.mrb[0].mxu0 %v33
    %v130 = vpop.f32.mrb[0].mxu0
    %v131 = vadd.f32 0.0, %v130
    %v132 = vpop.f32.mrb[0].mxu0
    %133 = vmatprep.mubr.f32.mxu0 0.0
    %134 = vmatmul.mubr.f32.gmra.mrb[0].mxu0 %v36
    %v135 = vpop.f32.mrb[0].mxu0
    %v136 = vadd.f32 0.0, %v135
    %v137 = vpop.f32.mrb[0].mxu0
    %138 = vmatprep.mubr.f32.mxu0 0.0
    %139 = vmatmul.mubr.f32.gmra.mrb[0].mxu0 %v39
    %v140 = vpop.f32.mrb[0].mxu0
    %v141 = vadd.f32 0.0, %v140
    %v142 = vpop.f32.mrb[0].mxu0
    %143 = vmatprep.mubr.f32.mxu0 0.0
    %144 = vmatmul.mubr.f32.gmra.mrb[0].mxu0 %v42
    %v145 = vpop.f32.mrb[0].mxu0
    %v146 = vadd.f32 0.0, %v145
    %v147 = vpop.f32.mrb[0].mxu0
    %148 = vmatprep.mubr.f32.mxu0 0.0
    %149 = vmatmul.mubr.f32.gmra.mrb[0].mxu0 %v45
    %v150 = vpop.f32.mrb[0].mxu0
    %v151 = vadd.f32 0.0, %v150
    %v152 = vpop.f32.mrb[0].mxu0
    %153 = vmatprep.mubr.f32.mxu0 0.0
    %154 = vmatmul.mubr.f32.gmra.mrb[0].mxu0 %v48
    %v155 = vpop.f32.mrb[0].mxu0
    %v156 = vadd.f32 0.0, %v155
    %v157 = vpop.f32.mrb[0].mxu0
    %158 = vdwg.mxu0
    %v159 = vmul.f32 %v121, %v141
    %v160 = vmul.f32 %v126, %v146
    %v161 = vmul.f32 %v131, %v151
    %v162 = vmul.f32 %v136, %v156
    %v163 = vld [vmem:[%s2] sm:$0xff]
    %v164 = vld [vmem:[%s2 + $0x8] sm:$0x1]
    %vm165 = vcmask 261120
    %v167 = vsel %vm165, %v163, 0
    %v170 = vsel %vm165, %v164, 0
    %172 = vmatprep.subr.mxu0 0.0
    %173 = vmatpush1.msra.mxu0 %v159
    %174 = vmatprep.subr.mxu0 0.0
    %175 = vmatpush1.msra.mxu0 %v160
    %176 = vmatprep.subr.mxu0 0.0
    %177 = vmatpush1.msra.mxu0 %v161
    %178 = vmatprep.subr.mxu0 0.0
    %179 = vmatpush1.msra.mxu0 %v162
    %180 = vmatprep.subr.mxu0 0.0
    %181 = vmatpush1.msra.mxu0 0.0
    %182 = vmatprep.subr.mxu0 0.0
    %183 = vmatpush1.msra.mxu0 0.0
    %184 = vmatprep.subr.mxu0 0.0
    %185 = vmatpush1.msra.mxu0 0.0
    %186 = vmatprep.subr.mxu0 0.0
    %187 = vmatpush1.msra.mxu0 0.0
    %188 = vmatprep.subr.mxu0 0.0
    %189 = vmatpush1.msra.mxu0 0.0
    %190 = vmatprep.subr.mxu0 0.0
    %191 = vmatpush1.msra.mxu0 0.0
    %192 = vmatprep.subr.mxu0 0.0
    %193 = vmatpush1.msra.mxu0 0.0
    %194 = vmatprep.subr.mxu0 0.0
    %195 = vmatpush1.msra.mxu0 0.0
    %196 = vmatprep.subr.mxu0 0.0
    %197 = vmatpush1.msra.mxu0 0.0
    %198 = vmatprep.subr.mxu0 0.0
    %199 = vmatpush1.msra.mxu0 0.0
    %200 = vmatprep.subr.mxu0 0.0
    %201 = vmatpush1.msra.mxu0 0.0
    %202 = vmatprep.subr.mxu0 0.0
    %203 = vmatpush1.msra.mxu0 0.0
    %204 = vmatprep.subr.mxu0 0.0
    %205 = vmatpush1.msra.mxu0 0.0
    %206 = vmatprep.subr.mxu0 0.0
    %207 = vmatpush1.msra.mxu0 0.0
    %208 = vmatprep.subr.mxu0 0.0
    %209 = vmatpush1.msra.mxu0 0.0
    %210 = vmatprep.subr.mxu0 0.0
    %211 = vmatpush1.msra.mxu0 0.0
    %212 = vmatprep.subr.mxu0 0.0
    %213 = vmatpush1.msra.mxu0 0.0
    %214 = vmatprep.subr.mxu0 0.0
    %215 = vmatpush1.msra.mxu0 0.0
    %216 = vmatprep.subr.mxu0 0.0
    %217 = vmatpush1.msra.mxu0 0.0
    %218 = vmatprep.subr.mxu0 0.0
    %219 = vmatpush1.msra.mxu0 0.0
    %220 = vmatprep.subr.mxu0 0.0
    %221 = vmatpush1.msra.mxu0 0.0
    %222 = vmatprep.subr.mxu0 0.0
    %223 = vmatpush1.msra.mxu0 0.0
    %224 = vmatprep.subr.mxu0 0.0
    %225 = vmatpush1.msra.mxu0 0.0
    %226 = vmatprep.subr.mxu0 0.0
    %227 = vmatpush1.msra.mxu0 0.0
    %228 = vmatprep.subr.mxu0 0.0
    %229 = vmatpush1.msra.mxu0 0.0
    %230 = vmatprep.subr.mxu0 0.0
    %231 = vmatpush1.msra.mxu0 0.0
    %232 = vmatprep.subr.mxu0 0.0
    %233 = vmatpush1.msra.mxu0 0.0
    %234 = vmatprep.subr.mxu0 0.0
    %235 = vmatpush1.msra.mxu0 0.0
    %236 = vmatprep.mubr.f32.mxu0 0.0
    %237 = vmatmul.mubr.f32.gmra.mrb[0].mxu0 %v167
    %v238 = vpop.f32.mrb[0].mxu0
    %v239 = vadd.f32 0.0, %v238
    %v240 = vpop.f32.mrb[0].mxu0
    %241 = vmatprep.mubr.f32.mxu0 0.0
    %242 = vmatmul.mubr.f32.gmra.mrb[0].mxu0 %v170
    %v243 = vpop.f32.mrb[0].mxu0
    %v244 = vadd.f32 0.0, %v243
    %v245 = vpop.f32.mrb[0].mxu0
    %246 = vdwg.mxu0
    %247 = vst [vmem:[#allocation2] sm:$0xff] %v239
    %248 = vst [vmem:[#allocation2 + $0x8] sm:$0x1] %v244
    // Predicated region
    $region14: #{tpu_custom_call.1} parent=1 // pred_check
      _
    $region15: #{tpu_custom_call.1} parent=1 // pred_check_branch
      %250 = sbr.rel (0) target = $region17
    $region16: #{tpu_custom_call.1} parent=1 // pred_region
      %s252 = ssub.s32 256, 256
      %253 = vsyncadd [#allocation3], %s252
      %s254 = sshll.u32 [#allocation2], 4
      %s255 = int_to_ptr.vmem [resolvable:$true] %s254
      %260 = dma.vmem_to_hbm [thread:$0]  %s255, 256, %s3, [#allocation3], 128, 128, 8
    $region17: #{tpu_custom_call.1} parent=1 // pred_fallthru
      _
    // Predicated region
    $region18: #{tpu_custom_call.1} parent=1 // pred_check
      _
    $region19: #{tpu_custom_call.1} parent=1 // pred_check_branch
      %262 = sbr.rel (0) target = $region21
    $region20: #{tpu_custom_call.1} parent=1 // pred_region
      %263 = dma.done [#allocation3], 256
    $region21: #{tpu_custom_call.1} parent=1 // pred_fallthru
      _
    %264 = vsyncpa [#allocation3], 1

</llo_original>
